<compile_context>
chip_gen: v7x
topology: tpu7x:2x2x1
jax: 0.10.0
libtpu: 0.0.40
codegen_flags: <defaults>
</compile_context>

<pallas_src>
import functools

import jax
import jax.numpy as jnp
from jax.experimental import pallas as pl
from jax.experimental.pallas import tpu as pltpu


def bert_output_kernel(x_ref, w_ref, b_ref, res_ref, gamma_ref, beta_ref, o_ref,
                       *, eps, inv_h):
    # x_ref:     [TM, I]  hidden_states tile (native / matmul dtype)
    # w_ref:     [I, H]   dense weight, pre-transposed in the wrapper (VMEM-resident)
    # b_ref:     [1, H]   dense bias
    # res_ref:   [TM, H]  residual input_tensor tile
    # gamma_ref: [1, H]   LayerNorm weight
    # beta_ref:  [1, H]   LayerNorm bias
    # o_ref:     [TM, H]  output tile

    # Dense: [TM, I] @ [I, H] -> [TM, H], fp32 accumulation on the MXU (no transpose needed).
    y = jnp.dot(x_ref[...], w_ref[...], preferred_element_type=jnp.float32)
    y = y + b_ref[...].astype(jnp.float32)

    # Dropout is identity at inference.
    # TODO(synk): training-mode dropout (hidden_dropout_prob) not implemented.
    y = y + res_ref[...].astype(jnp.float32)

    # Fused LayerNorm over the hidden (lane) dim, fp32 math:
    # one reduction pass (sum & sum-of-squares), one multiply-add output pass.
    s1 = jnp.sum(y, axis=-1, keepdims=True)
    s2 = jnp.sum(y * y, axis=-1, keepdims=True)
    mean = s1 * inv_h
    var = s2 * inv_h - mean * mean
    inv_std = jax.lax.rsqrt(var + eps)                           # EUP, per token row
    scale = inv_std * gamma_ref[...].astype(jnp.float32)         # [TM, H]
    out = (y - mean) * scale + beta_ref[...].astype(jnp.float32)

    o_ref[...] = out.astype(o_ref.dtype)


def _pick_tm(m, tm_max):
    """Largest multiple-of-8 tile <= tm_max that divides m exactly (no padded tail)."""
    if m <= tm_max:
        return m
    t = (tm_max // 8) * 8
    while t >= 128:
        if m % t == 0:
            return t
        t -= 8
    return tm_max  # fall back: Pallas masks the partial trailing tile


def bert_output(hidden_states, input_tensor, dense_w, dense_b, ln_w, ln_b,
                *, eps=1e-12, tm=512, matmul_dtype=None, core_parallel=False):
    """hidden_states: [B, S, I], input_tensor: [B, S, H], dense_w: [H, I] -> [B, S, H].

    matmul_dtype: optional dtype (e.g. jnp.bfloat16) to feed the MXU; fp32 accumulation
    and fp32 LayerNorm math are kept regardless.
    core_parallel: set True on v7x to shard the token-tile axis across both TensorCores.
    tm: max token-tile; 512 is a good default for v5e/v7x, use 1024 on v6e (128 MiB VMEM).
    """
    B, S, I = hidden_states.shape
    H = input_tensor.shape[-1]
    M = B * S
    out_dtype = hidden_states.dtype

    tm = _pick_tm(M, tm)
    grid_m = pl.cdiv(M, tm)

    x2d = hidden_states.reshape(M, I)
    res2d = input_tensor.reshape(M, H)
    # One-time wrapper transpose to [I, H]: kernel contracts the natural (row x col) way,
    # so no per-grid-step XLU transpose of the ~I*H resident weight tile.
    w_t = jnp.transpose(dense_w)                                  # [I, H]
    if matmul_dtype is not None:
        x2d = x2d.astype(matmul_dtype)
        w_t = w_t.astype(matmul_dtype)
    b = dense_b.reshape(1, H)
    gamma = ln_w.reshape(1, H)
    beta = ln_b.reshape(1, H)

    # VMEM budget: resident single-buffered weight + double-buffered x/res/out tiles
    # + fp32 LN temporaries, with headroom; clamped to a v7x-safe ceiling.
    sx = x2d.dtype.itemsize
    sr = res2d.dtype.itemsize
    so = jnp.dtype(out_dtype).itemsize
    est = (I * H * sx            # resident weight (single buffer)
           + 2 * tm * I * sx     # x tiles (double-buffered)
           + 2 * tm * H * sr     # residual tiles
           + 2 * tm * H * so     # output tiles
           + 3 * tm * H * 4      # fp32 temporaries (y / scale / out)
           + 4 * H * 4)          # bias / gamma / beta
    vmem_limit = int(min(max(1.5 * est + (4 << 20), 32 << 20), 56 << 20))

    resident = dict(pipeline_mode=pl.Buffered(1))  # constant index_map -> one buffer

    cost = pl.CostEstimate(
        flops=2 * M * I * H,
        transcendentals=M,  # one rsqrt per token row
        bytes_accessed=(M * I * sx + I * H * sx + M * H * sr + M * H * so),
    )

    semantics = (pltpu.CORE_PARALLEL,) if core_parallel else ("parallel",)

    out2d = pl.pallas_call(
        functools.partial(bert_output_kernel, eps=eps, inv_h=1.0 / H),
        out_shape=jax.ShapeDtypeStruct((M, H), out_dtype),
        grid=(grid_m,),
        in_specs=[
            pl.BlockSpec((tm, I), lambda i: (i, 0)),             # x tile (pipelined)
            pl.BlockSpec((I, H), lambda i: (0, 0), **resident),  # weight, resident
            pl.BlockSpec((1, H), lambda i: (0, 0), **resident),  # bias, resident
            pl.BlockSpec((tm, H), lambda i: (i, 0)),             # residual tile (pipelined)
            pl.BlockSpec((1, H), lambda i: (0, 0), **resident),  # LN gamma, resident
            pl.BlockSpec((1, H), lambda i: (0, 0), **resident),  # LN beta, resident
        ],
        out_specs=pl.BlockSpec((tm, H), lambda i: (i, 0)),
        compiler_params=pltpu.CompilerParams(
            dimension_semantics=semantics,
            vmem_limit_bytes=vmem_limit,
        ),
        cost_estimate=cost,
    )(x2d, w_t, b, res2d, gamma, beta)

    return out2d.reshape(B, S, H)


if __name__ == "__main__":
    # Small config: batch=2, seq=8, intermediate_size=128, hidden_size=32
    B, S, I, H = 2, 8, 128, 32

    key = jax.random.PRNGKey(0)
    k1, k2, k3, k4 = jax.random.split(key, 4)

    hidden_states = jax.random.normal(k1, (B, S, I), dtype=jnp.float32)
    input_tensor = jax.random.normal(k2, (B, S, H), dtype=jnp.float32)

    # Deterministic synthetic parameters (PyTorch Linear weight layout: [out, in] = [H, I])
    dense_w = jax.random.normal(k3, (H, I), dtype=jnp.float32) * 0.02
    dense_b = jax.random.normal(k4, (H,), dtype=jnp.float32) * 0.02
    ln_w = jnp.ones((H,), dtype=jnp.float32)
    ln_b = jnp.zeros((H,), dtype=jnp.float32)

    out = bert_output(hidden_states, input_tensor, dense_w, dense_b, ln_w, ln_b)
    out = jax.block_until_ready(out)

    # Reference check in plain JAX
    y_ref = hidden_states @ dense_w.T + dense_b + input_tensor
    mu = y_ref.mean(-1, keepdims=True)
    var = ((y_ref - mu) ** 2).mean(-1, keepdims=True)
    ref = (y_ref - mu) / jnp.sqrt(var + 1e-12) * ln_w + ln_b
    assert out.shape == (B, S, H)
    assert jnp.allclose(out, ref, atol=1e-4, rtol=1e-4), "mismatch vs reference"

    print("KERNEL_OK")
</pallas_src>

<mosaic_0001>
module attributes {stable_mosaic.version = 11 : i64} {
  func.func @bert_output_kernel(%arg0: i32, %arg1: memref<16x128xf32, #tpu.memory_space<vmem>>, %arg2: memref<128x32xf32, #tpu.memory_space<vmem>>, %arg3: memref<1x32xf32, #tpu.memory_space<vmem>>, %arg4: memref<16x32xf32, #tpu.memory_space<vmem>>, %arg5: memref<1x32xf32, #tpu.memory_space<vmem>>, %arg6: memref<1x32xf32, #tpu.memory_space<vmem>>, %arg7: memref<16x32xf32, #tpu.memory_space<vmem>>) attributes {dimension_semantics = [#tpu.dimension_semantics<parallel>], iteration_bounds = array<i64: 1>, scalar_prefetch = 0 : i64, scratch_operands = 0 : i64, tpu.core_type = #tpu.core_type<tc>, window_params = [{transform_indices = @transform_0, window_bounds = array<i64: 16, 128>}, {pipeline_mode = #tpu.pipeline_mode<synchronous>, transform_indices = @transform_1, window_bounds = array<i64: 128, 32>}, {pipeline_mode = #tpu.pipeline_mode<synchronous>, transform_indices = @transform_2, window_bounds = array<i64: 1, 32>}, {transform_indices = @transform_3, window_bounds = array<i64: 16, 32>}, {pipeline_mode = #tpu.pipeline_mode<synchronous>, transform_indices = @transform_4, window_bounds = array<i64: 1, 32>}, {pipeline_mode = #tpu.pipeline_mode<synchronous>, transform_indices = @transform_5, window_bounds = array<i64: 1, 32>}, {transform_indices = @transform_6, window_bounds = array<i64: 16, 32>}]} {
    %c0 = arith.constant 0 : index
    %c0_0 = arith.constant 0 : index
    %0 = vector.load %arg1[%c0, %c0_0] : memref<16x128xf32, #tpu.memory_space<vmem>>, vector<16x128xf32>
    %c0_1 = arith.constant 0 : index
    %c0_2 = arith.constant 0 : index
    %1 = vector.load %arg2[%c0_1, %c0_2] : memref<128x32xf32, #tpu.memory_space<vmem>>, vector<128x32xf32>
    %cst = arith.constant dense<0.000000e+00> : vector<16x32xf32>
    %2 = tpu.matmul %0, %1, %cst {dimension_numbers = #tpu.dot_dimension_numbers<[1], [0], [0], [1], [0, 0, 1, 1], [], []>} : vector<16x128xf32>, vector<128x32xf32>, vector<16x32xf32> -> vector<16x32xf32>
    %c0_3 = arith.constant 0 : index
    %c0_4 = arith.constant 0 : index
    %3 = vector.load %arg3[%c0_3, %c0_4] : memref<1x32xf32, #tpu.memory_space<vmem>>, vector<1x32xf32>
    %4 = vector.broadcast %3 : vector<1x32xf32> to vector<16x32xf32>
    %5 = arith.addf %2, %4 : vector<16x32xf32>
    %c0_5 = arith.constant 0 : index
    %c0_6 = arith.constant 0 : index
    %6 = vector.load %arg4[%c0_5, %c0_6] : memref<16x32xf32, #tpu.memory_space<vmem>>, vector<16x32xf32>
    %7 = arith.addf %5, %6 : vector<16x32xf32>
    %cst_7 = arith.constant dense<0.000000e+00> : vector<16xf32>
    %8 = vector.multi_reduction <add>, %7, %cst_7 [1] : vector<16x32xf32> to vector<16xf32>
    %9 = vector.shape_cast %8 : vector<16xf32> to vector<16x1xf32>
    %10 = arith.mulf %7, %7 : vector<16x32xf32>
    %cst_8 = arith.constant dense<0.000000e+00> : vector<16xf32>
    %11 = vector.multi_reduction <add>, %10, %cst_8 [1] : vector<16x32xf32> to vector<16xf32>
    %12 = vector.shape_cast %11 : vector<16xf32> to vector<16x1xf32>
    %cst_9 = arith.constant 3.125000e-02 : f32
    %13 = vector.broadcast %cst_9 : f32 to vector<16x1xf32>
    %14 = arith.mulf %9, %13 : vector<16x1xf32>
    %cst_10 = arith.constant 3.125000e-02 : f32
    %15 = vector.broadcast %cst_10 : f32 to vector<16x1xf32>
    %16 = arith.mulf %12, %15 : vector<16x1xf32>
    %17 = arith.mulf %14, %14 : vector<16x1xf32>
    %18 = arith.subf %16, %17 : vector<16x1xf32>
    %cst_11 = arith.constant 9.99999996E-13 : f32
    %19 = vector.broadcast %cst_11 : f32 to vector<16x1xf32>
    %20 = arith.addf %18, %19 : vector<16x1xf32>
    %21 = math.rsqrt %20 : vector<16x1xf32>
    %c0_12 = arith.constant 0 : index
    %c0_13 = arith.constant 0 : index
    %22 = vector.load %arg5[%c0_12, %c0_13] : memref<1x32xf32, #tpu.memory_space<vmem>>, vector<1x32xf32>
    %23 = vector.broadcast %21 : vector<16x1xf32> to vector<16x32xf32>
    %24 = vector.broadcast %22 : vector<1x32xf32> to vector<16x32xf32>
    %25 = arith.mulf %23, %24 : vector<16x32xf32>
    %26 = vector.broadcast %14 : vector<16x1xf32> to vector<16x32xf32>
    %27 = arith.subf %7, %26 : vector<16x32xf32>
    %28 = arith.mulf %27, %25 : vector<16x32xf32>
    %c0_14 = arith.constant 0 : index
    %c0_15 = arith.constant 0 : index
    %29 = vector.load %arg6[%c0_14, %c0_15] : memref<1x32xf32, #tpu.memory_space<vmem>>, vector<1x32xf32>
    %30 = vector.broadcast %29 : vector<1x32xf32> to vector<16x32xf32>
    %31 = arith.addf %28, %30 : vector<16x32xf32>
    %c0_16 = arith.constant 0 : index
    %c0_17 = arith.constant 0 : index
    %32 = vector.load %arg7[%c0_16, %c0_17] : memref<16x32xf32, #tpu.memory_space<vmem>>, vector<16x32xf32>
    tpu.vector_store %arg7[%c0_16, %c0_17], %31 {strides = array<i32>} : memref<16x32xf32, #tpu.memory_space<vmem>>, vector<16x32xf32>,
    return
  }
  func.func @transform_0(%arg0: i32) -> (i32, i32) {
    %c0_i32 = arith.constant 0 : i32
    %c0_i32_0 = arith.constant 0 : i32
    return %arg0, %c0_i32 : i32, i32
  }
  func.func @transform_1(%arg0: i32) -> (i32, i32) {
    %c0_i32 = arith.constant 0 : i32
    %c0_i32_0 = arith.constant 0 : i32
    %c0_i32_1 = arith.constant 0 : i32
    return %c0_i32, %c0_i32_0 : i32, i32
  }
  func.func @transform_2(%arg0: i32) -> (i32, i32) {
    %c0_i32 = arith.constant 0 : i32
    %c0_i32_0 = arith.constant 0 : i32
    %c0_i32_1 = arith.constant 0 : i32
    return %c0_i32, %c0_i32_0 : i32, i32
  }
  func.func @transform_3(%arg0: i32) -> (i32, i32) {
    %c0_i32 = arith.constant 0 : i32
    %c0_i32_0 = arith.constant 0 : i32
    return %arg0, %c0_i32 : i32, i32
  }
  func.func @transform_4(%arg0: i32) -> (i32, i32) {
    %c0_i32 = arith.constant 0 : i32
    %c0_i32_0 = arith.constant 0 : i32
    %c0_i32_1 = arith.constant 0 : i32
    return %c0_i32, %c0_i32_0 : i32, i32
  }
  func.func @transform_5(%arg0: i32) -> (i32, i32) {
    %c0_i32 = arith.constant 0 : i32
    %c0_i32_0 = arith.constant 0 : i32
    %c0_i32_1 = arith.constant 0 : i32
    return %c0_i32, %c0_i32_0 : i32, i32
  }
  func.func @transform_6(%arg0: i32) -> (i32, i32) {
    %c0_i32 = arith.constant 0 : i32
    %c0_i32_0 = arith.constant 0 : i32
    return %arg0, %c0_i32 : i32, i32
  }
}

</mosaic_0001>

<llo_original>
// kernel: tpu_custom_call.1
$region0: #{tpu_custom_call.1}
  #allocation0 [shape = 'u32[]', space=smem, size = 0x4, offset = 0x4, fixed_abs, tag = 'smem constant byte address 0x4 - core index']
  #allocation1 [shape = 'u32[144,128]{1,0:T(1,128)}', space=vmem, size = 0x12000, scoped, tag = 'internal scratch']
  %s0 = inlined_call_operand.vmem [shape: f32[16,128], index: 0, kind: input, shape index: {}]
  %s1 = inlined_call_operand.vmem [shape: f32[128,32], index: 1, kind: input, shape index: {}]
  %s2 = inlined_call_operand.vmem [shape: f32[1,32], index: 2, kind: input, shape index: {}]
  %s3 = inlined_call_operand.vmem [shape: f32[16,32], index: 3, kind: input, shape index: {}]
  %s4 = inlined_call_operand.vmem [shape: f32[1,32], index: 4, kind: input, shape index: {}]
  %s5 = inlined_call_operand.vmem [shape: f32[1,32], index: 5, kind: input, shape index: {}]
  %s6 = inlined_call_operand.hbm [shape: f32[16,32], index: 6, kind: output, shape index: {}]
  %s7 = sld [smem:[#allocation0]]
  $region34: #{tpu_custom_call.1} parent=0
    _
  %s9 = ssub.s32 1, %s7
  %s10 = scalar_select 0, %s9, %s7
  $region1: #{tpu_custom_call.1} parent=0
    #allocation2 [shape = 'u8[8192]{0}', space=vmem, size = 0x2000, scoped, tag = 'output window, operand 0, single buffered']
    #allocation3 [shape = 's32[1]{0}', space=sflag, size = 0x4, scoped, tag = 'scoped memory for tpu_custom_call.1']
    %11 = vsyncpa [#allocation3], 0
    // Predicated region
    $region2: #{tpu_custom_call.1} parent=1 // pred_check
      _
    $region3: #{tpu_custom_call.1} parent=1 // pred_check_branch
      %13 = sbr.rel (0) target = $region5
    $region4: #{tpu_custom_call.1} parent=1 // pred_region
      _
    $region5: #{tpu_custom_call.1} parent=1 // pred_fallthru
      _
    // Predicated region
    $region6: #{tpu_custom_call.1} parent=1 // pred_check
      _
    $region7: #{tpu_custom_call.1} parent=1 // pred_check_branch
      %15 = sbr.rel (0) target = $region9
    $region8: #{tpu_custom_call.1} parent=1 // pred_region
      _
    $region9: #{tpu_custom_call.1} parent=1 // pred_fallthru
      _
    // Predicated region
    $region10: #{tpu_custom_call.1} parent=1 // pred_check
      _
    $region11: #{tpu_custom_call.1} parent=1 // pred_check_branch
      %17 = sbr.rel (0) target = $region13
    $region12: #{tpu_custom_call.1} parent=1 // pred_region
      _
    $region13: #{tpu_custom_call.1} parent=1 // pred_fallthru
      _
    // Predicated region
    $region14: #{tpu_custom_call.1} parent=1 // pred_check
      _
    $region15: #{tpu_custom_call.1} parent=1 // pred_check_branch
      %19 = sbr.rel (0) target = $region17
    $region16: #{tpu_custom_call.1} parent=1 // pred_region
      _
    $region17: #{tpu_custom_call.1} parent=1 // pred_fallthru
      _
    // Predicated region
    $region18: #{tpu_custom_call.1} parent=1 // pred_check
      _
    $region19: #{tpu_custom_call.1} parent=1 // pred_check_branch
      %21 = sbr.rel (0) target = $region21
    $region20: #{tpu_custom_call.1} parent=1 // pred_region
      _
    $region21: #{tpu_custom_call.1} parent=1 // pred_fallthru
      _
    // Predicated region
    $region22: #{tpu_custom_call.1} parent=1 // pred_check
      _
    $region23: #{tpu_custom_call.1} parent=1 // pred_check_branch
      %23 = sbr.rel (0) target = $region25
    $region24: #{tpu_custom_call.1} parent=1 // pred_region
      _
    $region25: #{tpu_custom_call.1} parent=1 // pred_fallthru
      _
    %v24 = vld [vmem:[%s0] sm:$0xff]
    %v25 = vld [vmem:[%s0 + $0x8] sm:$0xff]
    %v26 = vld [vmem:[%s1] sm:$0xff]
    %v27 = vld [vmem:[%s1 + $0x8] sm:$0xff]
    %v28 = vld [vmem:[%s1 + $0x10] sm:$0xff]
    %v29 = vld [vmem:[%s1 + $0x18] sm:$0xff]
    %v30 = vld [vmem:[%s1 + $0x20] sm:$0xff]
    %v31 = vld [vmem:[%s1 + $0x28] sm:$0xff]
    %v32 = vld [vmem:[%s1 + $0x30] sm:$0xff]
    %v33 = vld [vmem:[%s1 + $0x38] sm:$0xff]
    %v34 = vld [vmem:[%s1 + $0x40] sm:$0xff]
    %v35 = vld [vmem:[%s1 + $0x48] sm:$0xff]
    %v36 = vld [vmem:[%s1 + $0x50] sm:$0xff]
    %v37 = vld [vmem:[%s1 + $0x58] sm:$0xff]
    %v38 = vld [vmem:[%s1 + $0x60] sm:$0xff]
    %v39 = vld [vmem:[%s1 + $0x68] sm:$0xff]
    %v40 = vld [vmem:[%s1 + $0x70] sm:$0xff]
    %v41 = vld [vmem:[%s1 + $0x78] sm:$0xff]
    %v42 = vld [vmem:[%s2] sm:$0x1]
    %v44 = vlaneseq
    %v45 = vshrl.u32 %v44, 7
    %v46 = vsub.s32 0, %v45
    %v47 = vrot.slane %v42, %v46
    %49 = vmatprep.subr.mxu0 0.0
    %50 = vmatpush1.msra.mxu0 %v26
    %51 = vmatprep.subr.mxu0 0.0
    %52 = vmatpush1.msra.mxu0 %v27
    %53 = vmatprep.subr.mxu0 0.0
    %54 = vmatpush1.msra.mxu0 %v28
    %55 = vmatprep.subr.mxu0 0.0
    %56 = vmatpush1.msra.mxu0 %v29
    %57 = vmatprep.subr.mxu0 0.0
    %58 = vmatpush1.msra.mxu0 %v30
    %59 = vmatprep.subr.mxu0 0.0
    %60 = vmatpush1.msra.mxu0 %v31
    %61 = vmatprep.subr.mxu0 0.0
    %62 = vmatpush1.msra.mxu0 %v32
    %63 = vmatprep.subr.mxu0 0.0
    %64 = vmatpush1.msra.mxu0 %v33
    %65 = vmatprep.subr.mxu0 0.0
    %66 = vmatpush1.msra.mxu0 %v34
    %67 = vmatprep.subr.mxu0 0.0
    %68 = vmatpush1.msra.mxu0 %v35
    %69 = vmatprep.subr.mxu0 0.0
    %70 = vmatpush1.msra.mxu0 %v36
    %71 = vmatprep.subr.mxu0 0.0
    %72 = vmatpush1.msra.mxu0 %v37
    %73 = vmatprep.subr.mxu0 0.0
    %74 = vmatpush1.msra.mxu0 %v38
    %75 = vmatprep.subr.mxu0 0.0
    %76 = vmatpush1.msra.mxu0 %v39
    %77 = vmatprep.subr.mxu0 0.0
    %78 = vmatpush1.msra.mxu0 %v40
    %79 = vmatprep.subr.mxu0 0.0
    %80 = vmatpush1.msra.mxu0 %v41
    %81 = vmatprep.subr.mxu0 0.0
    %82 = vmatpush1.msra.mxu0 0.0
    %83 = vmatprep.subr.mxu0 0.0
    %84 = vmatpush1.msra.mxu0 0.0
    %85 = vmatprep.subr.mxu0 0.0
    %86 = vmatpush1.msra.mxu0 0.0
    %87 = vmatprep.subr.mxu0 0.0
    %88 = vmatpush1.msra.mxu0 0.0
    %89 = vmatprep.subr.mxu0 0.0
    %90 = vmatpush1.msra.mxu0 0.0
    %91 = vmatprep.subr.mxu0 0.0
    %92 = vmatpush1.msra.mxu0 0.0
    %93 = vmatprep.subr.mxu0 0.0
    %94 = vmatpush1.msra.mxu0 0.0
    %95 = vmatprep.subr.mxu0 0.0
    %96 = vmatpush1.msra.mxu0 0.0
    %97 = vmatprep.subr.mxu0 0.0
    %98 = vmatpush1.msra.mxu0 0.0
    %99 = vmatprep.subr.mxu0 0.0
    %100 = vmatpush1.msra.mxu0 0.0
    %101 = vmatprep.subr.mxu0 0.0
    %102 = vmatpush1.msra.mxu0 0.0
    %103 = vmatprep.subr.mxu0 0.0
    %104 = vmatpush1.msra.mxu0 0.0
    %105 = vmatprep.subr.mxu0 0.0
    %106 = vmatpush1.msra.mxu0 0.0
    %107 = vmatprep.subr.mxu0 0.0
    %108 = vmatpush1.msra.mxu0 0.0
    %109 = vmatprep.subr.mxu0 0.0
    %110 = vmatpush1.msra.mxu0 0.0
    %111 = vmatprep.subr.mxu0 0.0
    %112 = vmatpush1.msra.mxu0 0.0
    %113 = vmatprep.mubr.f32.mxu0 0.0
    %114 = vmatmul.mubr.f32.gmra.mrb[0].mxu0 %v24
    %v115 = vpop.f32.mrb[0].mxu0
    %v116 = vadd.f32 %v47, %v115
    %v117 = vpop.f32.mrb[0].mxu0
    %118 = vmatprep.mubr.f32.mxu0 0.0
    %119 = vmatmul.mubr.f32.gmra.mrb[0].mxu0 %v25
    %v120 = vpop.f32.mrb[0].mxu0
    %v121 = vadd.f32 %v47, %v120
    %v122 = vpop.f32.mrb[0].mxu0
    %123 = vdwg.mxu0
    %v124 = vld [vmem:[%s3] sm:$0xff]
    %v125 = vld [vmem:[%s3 + $0x8] sm:$0xff]
    %v126 = vadd.f32 %v116, %v124
    %v127 = vadd.f32 %v121, %v125
    %vm128 = vcmask 261120
    %v129 = vsel %vm128, %v126, 0.0
    %130 = vadd.xlane.f32.xlu0 %v129
    %v131 = vpop.xlane.xlu0 %130
    %v132 = vsel %vm128, %v127, 0.0
    %133 = vadd.xlane.f32.xlu0 %v132
    %v134 = vpop.xlane.xlu0 %133
    %v135 = vmul.f32 %v126, %v126
    %v136 = vmul.f32 %v127, %v127
    %v137 = vsel %vm128, %v135, 0.0
    %138 = vadd.xlane.f32.xlu0 %v137
    %v139 = vpop.xlane.xlu0 %138
    %v140 = vsel %vm128, %v136, 0.0
    %141 = vadd.xlane.f32.xlu0 %v140
    %v142 = vpop.xlane.xlu0 %141
    %v143 = vmul.f32 %v131, 0.03125
    %v144 = vmul.f32 %v134, 0.03125
    %v145 = vmul.f32 %v139, 0.03125
    %v146 = vmul.f32 %v142, 0.03125
    %v147 = vmul.f32 %v143, %v143
    %v148 = vmul.f32 %v144, %v144
    %v149 = vsub.f32 %v145, %v147
    %v150 = vsub.f32 %v146, %v148
    %v151 = vadd.f32 %v149, 1e-12
    %v152 = vadd.f32 %v150, 1e-12
    %v153 = vrsqrt.pop %v151
    %v154 = vrsqrt.pop %v152
    %v155 = vld [vmem:[%s4] sm:$0x1]
    %v157 = vlaneseq
    %v158 = vshrl.u32 %v157, 7
    %v159 = vsub.s32 0, %v158
    %v160 = vrot.slane %v155, %v159
    %v162 = vmul.f32 %v153, %v160
    %v163 = vmul.f32 %v154, %v160
    %v164 = vsub.f32 %v126, %v143
    %v165 = vsub.f32 %v127, %v144
    %v166 = vmul.f32 %v164, %v162
    %v167 = vmul.f32 %v165, %v163
    %v168 = vld [vmem:[%s5] sm:$0x1]
    %v170 = vlaneseq
    %v171 = vshrl.u32 %v170, 7
    %v172 = vsub.s32 0, %v171
    %v173 = vrot.slane %v168, %v172
    %v175 = vadd.f32 %v166, %v173
    %v176 = vadd.f32 %v167, %v173
    %177 = vst.msk [vmem:[#allocation2] sm:$0xff] %vm128, %v175
    %178 = vst.msk [vmem:[#allocation2 + $0x8] sm:$0xff] %vm128, %v176
    // Predicated region
    $region26: #{tpu_custom_call.1} parent=1 // pred_check
      _
    $region27: #{tpu_custom_call.1} parent=1 // pred_check_branch
      %180 = sbr.rel (0) target = $region29
    $region28: #{tpu_custom_call.1} parent=1 // pred_region
      %s182 = ssub.s32 256, 256
      %183 = vsyncadd [#allocation3], %s182
      %s184 = sshll.u32 [#allocation2], 4
      %s185 = int_to_ptr.vmem [resolvable:$true] %s184
      %190 = dma.vmem_to_hbm [thread:$0]  %s185, 256, %s6, [#allocation3], 128, 128, 8
    $region29: #{tpu_custom_call.1} parent=1 // pred_fallthru
      _
    // Predicated region
    $region30: #{tpu_custom_call.1} parent=1 // pred_check
      _
    $region31: #{tpu_custom_call.1} parent=1 // pred_check_branch
      %192 = sbr.rel (0) target = $region33
    $region32: #{tpu_custom_call.1} parent=1 // pred_region
      %193 = dma.done [#allocation3], 256
    $region33: #{tpu_custom_call.1} parent=1 // pred_fallthru
      _
    %194 = vsyncpa [#allocation3], 1

</llo_original>
